<compile_context>
chip_gen: v7x
topology: tpu7x:2x2x1
jax: 0.10.0
libtpu: 0.0.40
codegen_flags: <defaults>
</compile_context>

<pallas_src>
import math

import jax
import jax.numpy as jnp
from jax.experimental import pallas as pl
from jax.experimental.pallas import tpu as pltpu


def _layer_scale_kernel(x_ref, g_ref, o_ref):
    # x_ref: (tile_rows, L) block; g_ref: (1, L) block (same for every tile).
    o_ref[...] = (x_ref[...] * g_ref[...]).astype(o_ref.dtype)


def _sublane_multiple(dtype):
    # Second-to-last block dim must be a multiple of 8 (f32) / 16 (bf16) / 32 (i8).
    itemsize = jnp.dtype(dtype).itemsize
    return max(8, 32 // max(1, itemsize))


def layer_scale(x, gamma, *, target_tile_bytes=4 * 1024 * 1024):
    """LayerScale forward: out = x * gamma (gamma shape (dim,), dim = x.shape[-1])."""
    orig_shape = x.shape
    dim = orig_shape[-1]
    assert gamma.shape == (dim,)

    # Cast once in the wrapper so the kernel multiply is a single same-dtype vmul.
    gamma = gamma.astype(x.dtype)

    total = x.size
    rows = total // dim

    # Lane-dense layout: pick a lane width L that is a multiple of 128 and of dim
    # so gamma tiles cleanly across it. Fall back to full-extent dim if the row
    # count doesn't reshape evenly (still legal: last block dim == full array dim).
    if dim % 128 == 0:
        L, rep = dim, 1
    else:
        L = math.lcm(dim, 128)
        rep = L // dim
        if rep == 0 or rows % rep != 0:
            L, rep = dim, 1

    rows2 = rows // rep
    x2d = x.reshape(rows2, L)
    g2d = jnp.tile(gamma, rep).reshape(1, L)

    itemsize = jnp.dtype(x.dtype).itemsize
    sub = _sublane_multiple(x.dtype)

    # Large, sublane-aligned row tile (~target_tile_bytes) so the ~0.35us
    # per-grid-step overhead amortizes and we run near the HBM roofline.
    tr = (target_tile_bytes // max(1, L * itemsize)) // sub * sub
    tr = max(sub, tr)
    if tr >= rows2:
        tr = rows2  # single full-extent block (always layout-legal)
    n_steps = pl.cdiv(rows2, tr)

    tile_bytes = tr * L * itemsize
    # Budget: x-in + out, double-buffered, plus gamma and slack. Clamp to 48 MiB
    # so it also fits v7x's 64 MiB VMEM; floor covers v5e's 16 MiB default limit.
    vmem_limit = int(
        min(48 * 1024 * 1024,
            max(8 * 1024 * 1024, 4 * tile_bytes + 2 * L * itemsize + (2 << 20))))

    out2d = pl.pallas_call(
        _layer_scale_kernel,
        out_shape=jax.ShapeDtypeStruct((rows2, L), x.dtype),
        grid_spec=pltpu.PrefetchScalarGridSpec(
            num_scalar_prefetch=0,
            grid=(n_steps,),
            in_specs=[
                pl.BlockSpec((tr, L), lambda i: (i, 0)),
                pl.BlockSpec((1, L), lambda i: (0, 0)),
            ],
            out_specs=pl.BlockSpec((tr, L), lambda i: (i, 0)),
        ),
        compiler_params=pltpu.CompilerParams(
            dimension_semantics=("parallel",),
            vmem_limit_bytes=vmem_limit,
        ),
    )(x2d, g2d)

    return out2d.reshape(orig_shape)


if __name__ == "__main__":
    key = jax.random.PRNGKey(0)
    batch, seq, dim = 2, 8, 32
    init_values = 1e-05

    # Matches nn.Parameter(init_values * torch.ones(dim)).
    gamma = init_values * jnp.ones((dim,), dtype=jnp.float32)
    x = jax.random.normal(key, (batch, seq, dim), dtype=jnp.float32)

    out = layer_scale(x, gamma)
    out = jax.block_until_ready(out)

    # Correctness check against plain JAX reference (x * gamma broadcast).
    ref = x * gamma
    assert out.shape == x.shape
    assert jnp.allclose(out, ref, atol=1e-6, rtol=1e-6)

    print("KERNEL_OK")
</pallas_src>

<mosaic_0001>
module attributes {stable_mosaic.version = 11 : i64} {
  func.func @_layer_scale_kernel(%arg0: i32, %arg1: memref<4x128xf32, #tpu.memory_space<vmem>>, %arg2: memref<1x128xf32, #tpu.memory_space<vmem>>, %arg3: memref<4x128xf32, #tpu.memory_space<vmem>>) attributes {dimension_semantics = [#tpu.dimension_semantics<parallel>], iteration_bounds = array<i64: 1>, scalar_prefetch = 0 : i64, scratch_operands = 0 : i64, tpu.core_type = #tpu.core_type<tc>, window_params = [{transform_indices = @transform_0, window_bounds = array<i64: 4, 128>}, {pipeline_mode = #tpu.pipeline_mode<synchronous>, transform_indices = @transform_1, window_bounds = array<i64: 1, 128>}, {transform_indices = @transform_2, window_bounds = array<i64: 4, 128>}]} {
    %c0 = arith.constant 0 : index
    %c0_0 = arith.constant 0 : index
    %0 = vector.load %arg1[%c0, %c0_0] : memref<4x128xf32, #tpu.memory_space<vmem>>, vector<4x128xf32>
    %c0_1 = arith.constant 0 : index
    %c0_2 = arith.constant 0 : index
    %1 = vector.load %arg2[%c0_1, %c0_2] : memref<1x128xf32, #tpu.memory_space<vmem>>, vector<1x128xf32>
    %2 = vector.broadcast %1 : vector<1x128xf32> to vector<4x128xf32>
    %3 = arith.mulf %0, %2 : vector<4x128xf32>
    %c0_3 = arith.constant 0 : index
    %c0_4 = arith.constant 0 : index
    %4 = vector.load %arg3[%c0_3, %c0_4] : memref<4x128xf32, #tpu.memory_space<vmem>>, vector<4x128xf32>
    tpu.vector_store %arg3[%c0_3, %c0_4], %3 {strides = array<i32>} : memref<4x128xf32, #tpu.memory_space<vmem>>, vector<4x128xf32>,
    return
  }
  func.func @transform_0(%arg0: i32) -> (i32, i32) {
    %c0_i32 = arith.constant 0 : i32
    %c0_i32_0 = arith.constant 0 : i32
    return %arg0, %c0_i32 : i32, i32
  }
  func.func @transform_1(%arg0: i32) -> (i32, i32) {
    %c0_i32 = arith.constant 0 : i32
    %c0_i32_0 = arith.constant 0 : i32
    %c0_i32_1 = arith.constant 0 : i32
    return %c0_i32, %c0_i32_0 : i32, i32
  }
  func.func @transform_2(%arg0: i32) -> (i32, i32) {
    %c0_i32 = arith.constant 0 : i32
    %c0_i32_0 = arith.constant 0 : i32
    return %arg0, %c0_i32 : i32, i32
  }
}

</mosaic_0001>

<llo_original>
// kernel: tpu_custom_call.1
$region0: #{tpu_custom_call.1}
  #allocation0 [shape = 'u32[]', space=smem, size = 0x4, offset = 0x4, fixed_abs, tag = 'smem constant byte address 0x4 - core index']
  #allocation1 [shape = 'u32[144,128]{1,0:T(1,128)}', space=vmem, size = 0x12000, scoped, tag = 'internal scratch']
  %s0 = inlined_call_operand.hbm [shape: f32[4,128], index: 0, kind: input, shape index: {}]
  %s1 = inlined_call_operand.vmem [shape: f32[1,128], index: 1, kind: input, shape index: {}]
  %s2 = inlined_call_operand.hbm [shape: f32[4,128], index: 2, kind: output, shape index: {}]
  %s3 = sld [smem:[#allocation0]]
  $region22: #{tpu_custom_call.1} parent=0
    _
  %s5 = ssub.s32 1, %s3
  %s6 = scalar_select 0, %s5, %s3
  $region1: #{tpu_custom_call.1} parent=0
    #allocation2 [shape = 'u8[2048]{0}', space=vmem, size = 0x800, scoped, tag = 'input window, operand 0, single buffered']
    #allocation3 [shape = 's32[1]{0}', space=sflag, size = 0x4, scoped, tag = 'scoped memory for tpu_custom_call.1']
    #allocation4 [shape = 's32[1]{0}', space=sflag, size = 0x4, scoped, tag = 'scoped memory for tpu_custom_call.1']
    #allocation5 [shape = 'u8[2048]{0}', space=vmem, size = 0x800, scoped, tag = 'output window, operand 0, single buffered']
    %7 = vsyncpa [#allocation3], 0
    %8 = vsyncpa [#allocation4], 0
    // Predicated region
    $region2: #{tpu_custom_call.1} parent=1 // pred_check
      _
    $region3: #{tpu_custom_call.1} parent=1 // pred_check_branch
      %10 = sbr.rel (0) target = $region5
    $region4: #{tpu_custom_call.1} parent=1 // pred_region
      %s12 = ssub.s32 64, 64
      %13 = vsyncadd [#allocation3], %s12
      %s15 = sshll.u32 [#allocation2], 4
      %s16 = int_to_ptr.vmem [resolvable:$true] %s15
      %18 = dma.hbm_to_vmem [thread:$0]  %s0, 64, %s16, [#allocation3]
    $region5: #{tpu_custom_call.1} parent=1 // pred_fallthru
      _
    // Predicated region
    $region6: #{tpu_custom_call.1} parent=1 // pred_check
      _
    $region7: #{tpu_custom_call.1} parent=1 // pred_check_branch
      %20 = sbr.rel (0) target = $region9
    $region8: #{tpu_custom_call.1} parent=1 // pred_region
      _
    $region9: #{tpu_custom_call.1} parent=1 // pred_fallthru
      _
    // Predicated region
    $region10: #{tpu_custom_call.1} parent=1 // pred_check
      _
    $region11: #{tpu_custom_call.1} parent=1 // pred_check_branch
      %22 = sbr.rel (0) target = $region13
    $region12: #{tpu_custom_call.1} parent=1 // pred_region
      %23 = dma.done [#allocation3], 64
    $region13: #{tpu_custom_call.1} parent=1 // pred_fallthru
      _
    %v24 = vld [vmem:[#allocation2] sm:$0xf]
    %v25 = vld [vmem:[%s1] sm:$0x1]
    %v27 = vlaneseq
    %v28 = vshrl.u32 %v27, 7
    %v29 = vsub.s32 0, %v28
    %v30 = vrot.slane %v25, %v29
    %v32 = vmul.f32 %v24, %v30
    %33 = vst [vmem:[#allocation5] sm:$0xf] %v32
    // Predicated region
    $region14: #{tpu_custom_call.1} parent=1 // pred_check
      _
    $region15: #{tpu_custom_call.1} parent=1 // pred_check_branch
      %35 = sbr.rel (0) target = $region17
    $region16: #{tpu_custom_call.1} parent=1 // pred_region
      %s37 = ssub.s32 64, 64
      %38 = vsyncadd [#allocation4], %s37
      %s40 = sshll.u32 [#allocation5], 4
      %s41 = int_to_ptr.vmem [resolvable:$true] %s40
      %43 = dma.vmem_to_hbm [thread:$0]  %s41, 64, %s2, [#allocation4]
    $region17: #{tpu_custom_call.1} parent=1 // pred_fallthru
      _
    // Predicated region
    $region18: #{tpu_custom_call.1} parent=1 // pred_check
      _
    $region19: #{tpu_custom_call.1} parent=1 // pred_check_branch
      %45 = sbr.rel (0) target = $region21
    $region20: #{tpu_custom_call.1} parent=1 // pred_region
      %46 = dma.done [#allocation4], 64
    $region21: #{tpu_custom_call.1} parent=1 // pred_fallthru
      _
    %47 = vsyncpa [#allocation3], 1
    %48 = vsyncpa [#allocation4], 1

</llo_original>
